<compile_context>
chip_gen: v7x
topology: tpu7x:2x2x1
jax: 0.10.0
libtpu: 0.0.40
codegen_flags: <defaults>
</compile_context>

<pallas_src>
import math

import jax
import jax.numpy as jnp
from jax.experimental import pallas as pl
from jax.experimental.pallas import tpu as pltpu

_LANE = 128


def _round_up(x, m):
    return ((x + m - 1) // m) * m


def _vmem_limit_bytes():
    """Per-generation VMEM budget: ~75% of physical, capped at 96 MiB.

    -> ~96 MiB on v5e/v6e (128 MiB parts), ~48 MiB on v7x (64 MiB per TC).
    Conservative 48 MiB fallback if the hardware query is unavailable.
    """
    cap = 64 * 1024 * 1024
    try:
        info = pltpu.get_tpu_info()
        cap = int(getattr(info, "vmem_capacity_bytes", cap))
    except Exception:
        pass
    return min((cap * 3) // 4, 96 * 1024 * 1024)


def _pad_to(a, rows, cols, dtype):
    """Cast + pad only the ragged edge (no full-size zeros materialization)."""
    if a.dtype != dtype:
        a = a.astype(dtype)
    pr = rows - a.shape[0]
    pc = cols - a.shape[1]
    if pr == 0 and pc == 0:
        return a
    return jnp.pad(a, ((0, pr), (0, pc)))


# ----------------------------- kernels --------------------------------------


def _make_fused_kernel(use_bias):
    """Whole problem resident in VMEM: out = adj @ (X @ W) (+ b)."""

    def kernel(x_ref, w_ref, adj_ref, *rest):
        if use_bias:
            b_ref, o_ref = rest
        else:
            (o_ref,) = rest
        support = jnp.dot(
            x_ref[...], w_ref[...], preferred_element_type=jnp.float32
        )
        out = jnp.dot(
            adj_ref[...],
            support.astype(adj_ref.dtype),
            preferred_element_type=jnp.float32,
        )
        if use_bias:
            out = out + b_ref[...].astype(jnp.float32)
        o_ref[...] = out.astype(o_ref.dtype)

    return kernel


def _support_kernel(x_ref, w_ref, s_ref):
    # support tile = X[i_tile, :] @ W   (MXU, f32 accumulation)
    s_ref[...] = jnp.dot(
        x_ref[...], w_ref[...], preferred_element_type=jnp.float32
    ).astype(s_ref.dtype)


def _make_agg_kernel(*, resident, use_bias, use_scratch, tk):
    """Stage 2: out[i] = sum_k adj[i, k] @ support[k] (+ bias).

    resident:   support ref is the full (n_pad, F_out) array (constant block);
                the k-chunk is sliced in-kernel.  Otherwise a (tk, F_out)
                streamed tile.
    use_scratch: accumulate in an f32 VMEM scratch (for non-f32 outputs);
                otherwise accumulate directly in the resident output block.
    """

    def kernel(adj_ref, s_ref, *rest):
        rest = list(rest)
        b_ref = rest.pop(0) if use_bias else None
        o_ref = rest.pop(0)
        acc_ref = rest.pop(0) if use_scratch else o_ref

        k = pl.program_id(1)

        @pl.when(k == 0)
        def _init():
            if use_bias and not use_scratch:
                # Add the bias once up front (accumulation is linear).
                acc_ref[...] = jnp.broadcast_to(
                    b_ref[...].astype(acc_ref.dtype), acc_ref.shape
                )
            else:
                acc_ref[...] = jnp.zeros_like(acc_ref)

        if resident:
            start = pl.multiple_of(k * tk, tk)
            s_blk = s_ref[pl.ds(start, tk), :]
        else:
            s_blk = s_ref[...]

        acc_ref[...] += jnp.dot(
            adj_ref[...], s_blk, preferred_element_type=jnp.float32
        )

        if use_scratch:

            @pl.when(k == pl.num_programs(1) - 1)
            def _finalize():
                res = acc_ref[...]
                if use_bias:
                    res = res + b_ref[...].astype(jnp.float32)
                o_ref[...] = res.astype(o_ref.dtype)

    return kernel


# ----------------------------- planning --------------------------------------


def _plan_stage1(n_pad, f_in_p, f_out_p, tk, in_ib, budget):
    cands = [m * tk for m in (4, 2, 1) if n_pad % (m * tk) == 0]
    for tm in cands:
        wset = 2 * tm * (f_in_p + f_out_p) * in_ib + 2 * f_in_p * f_out_p * in_ib
        if wset <= budget:
            return tm
    return tk


def _plan_stage2(n_pad, f_out_p, tk, in_ib, out_ib, use_scratch, budget):
    """Pick (row tile tm, support-resident?) under the VMEM budget."""
    cands = [m * tk for m in (4, 2, 1) if n_pad % (m * tk) == 0]
    multi = [tm for tm in cands if n_pad // tm >= 2]
    if multi:  # keep >= 2 row tiles so v7x's two TCs both get work
        cands = multi

    def fits(tm, resident):
        adj_b = 2 * tm * tk * in_ib                       # double-buffered adj
        out_b = 2 * tm * f_out_p * out_ib                 # output block
        sup_b = 2 * (n_pad if resident else tk) * f_out_p * in_ib
        acc_b = tm * f_out_p * 4 if use_scratch else 0
        return adj_b + out_b + sup_b + acc_b <= budget

    for tm in cands:          # prefer residency (halves stage-2 HBM reads)
        if fits(tm, True):
            return tm, True
    for tm in cands:          # then the biggest tile that fits streaming
        if fits(tm, False):
            return tm, False
    return tk, False


# ----------------------------- wrapper ----------------------------------------


def graph_convolution(x, adj, weight, bias=None, *, compute_dtype=None, fused=None):
    """Pallas TPU implementation of GraphConvolution.forward.

    x:      [N, F_in]     node features
    adj:    [N, N]        dense adjacency (torch.spmm on dense == matmul)
    weight: [F_in, F_out]
    bias:   [F_out] or None
    compute_dtype: optional MXU operand dtype (e.g. jnp.bfloat16); accumulation
        and the bias epilogue stay float32.  Default: x.dtype (exact parity).
    fused: force (True) / forbid (False) the single-call fused path; None = auto.
    """
    n, f_in = x.shape
    f_in_w, f_out = weight.shape
    assert f_in == f_in_w
    assert adj.shape == (n, n)

    out_dtype = x.dtype
    cdt = jnp.dtype(compute_dtype) if compute_dtype is not None else jnp.dtype(x.dtype)
    in_ib = cdt.itemsize
    out_ib = jnp.dtype(out_dtype).itemsize

    f_in_p = _round_up(f_in, _LANE)
    f_out_p = _round_up(f_out, _LANE)

    vmem_limit = _vmem_limit_bytes()

    bias_p = None
    if bias is not None:
        bias_p = (
            jnp.zeros((1, f_out_p), jnp.float32)
            .at[0, :f_out]
            .set(bias.reshape(-1).astype(jnp.float32))
        )

    # ---- fused single-call path for small graphs ----------------------------
    n_pad_f = _round_up(n, _LANE)
    fused_bytes = (
        n_pad_f * n_pad_f * in_ib            # adj
        + n_pad_f * f_in_p * in_ib           # x
        + f_in_p * f_out_p * in_ib           # W
        + n_pad_f * f_out_p * (4 + in_ib)    # f32 support (+ cast copy)
        + n_pad_f * f_out_p * out_ib         # out
        + f_out_p * 4                        # bias
    )
    fits_fused = (n_pad_f <= 2048) and (2 * fused_bytes <= vmem_limit)
    if fused is None:
        fused = fits_fused
    if fused and not fits_fused:
        fused = False

    if fused:
        x_p = _pad_to(x, n_pad_f, f_in_p, cdt)
        w_p = _pad_to(weight, f_in_p, f_out_p, cdt)
        adj_p = _pad_to(adj, n_pad_f, n_pad_f, cdt)
        vmem = pl.BlockSpec(memory_space=pltpu.MemorySpace.VMEM)
        args = [x_p, w_p, adj_p] + ([bias_p] if bias is not None else [])
        out_p = pl.pallas_call(
            _make_fused_kernel(bias is not None),
            out_shape=jax.ShapeDtypeStruct((n_pad_f, f_out_p), out_dtype),
            in_specs=[vmem] * len(args),
            out_specs=vmem,
            compiler_params=pltpu.CompilerParams(vmem_limit_bytes=vmem_limit),
        )(*args)
        return out_p[:n, :f_out]

    # ---- two-stage tiled path ------------------------------------------------
    tk = 256 if n > 128 else 128
    n_pad = _round_up(n, tk)

    x_p = _pad_to(x, n_pad, f_in_p, cdt)
    w_p = _pad_to(weight, f_in_p, f_out_p, cdt)
    adj_p = _pad_to(adj, n_pad, n_pad, cdt)

    # TODO(synk): for very large F_in / F_out the resident weight / output
    # columns should also be tiled (with their own accumulation axis).

    # ---- stage 1: support = X @ W  (row-tiled, pipelined, W resident) ----
    tm1 = _plan_stage1(n_pad, f_in_p, f_out_p, tk, in_ib, vmem_limit)
    support = pl.pallas_call(
        _support_kernel,
        out_shape=jax.ShapeDtypeStruct((n_pad, f_out_p), cdt),
        grid=(n_pad // tm1,),
        in_specs=[
            pl.BlockSpec((tm1, f_in_p), lambda i: (i, 0)),
            pl.BlockSpec((f_in_p, f_out_p), lambda i: (0, 0)),
        ],
        out_specs=pl.BlockSpec((tm1, f_out_p), lambda i: (i, 0)),
        compiler_params=pltpu.CompilerParams(
            dimension_semantics=("parallel",),
            vmem_limit_bytes=vmem_limit,
        ),
    )(x_p, w_p)

    # ---- stage 2: out = adj @ support (+ bias) ----
    use_scratch = jnp.dtype(out_dtype) != jnp.dtype(jnp.float32)
    tm, resident = _plan_stage2(
        n_pad, f_out_p, tk, in_ib, out_ib, use_scratch, vmem_limit
    )

    adj_spec = pl.BlockSpec((tm, tk), lambda i, k: (i, k))
    if resident:
        # Full support array resident in VMEM; k-chunk sliced in-kernel.
        sup_spec = pl.BlockSpec((n_pad, f_out_p), lambda i, k: (0, 0))
    else:
        sup_spec = pl.BlockSpec((tk, f_out_p), lambda i, k: (k, 0))
    out_spec = pl.BlockSpec((tm, f_out_p), lambda i, k: (i, 0))

    in_specs = [adj_spec, sup_spec]
    args = [adj_p, support]
    if bias is not None:
        in_specs.append(pl.BlockSpec((1, f_out_p), lambda i, k: (0, 0)))
        args.append(bias_p)
    scratch_shapes = (
        [pltpu.VMEM((tm, f_out_p), jnp.float32)] if use_scratch else []
    )

    kernel = _make_agg_kernel(
        resident=resident,
        use_bias=bias is not None,
        use_scratch=use_scratch,
        tk=tk,
    )
    out_p = pl.pallas_call(
        kernel,
        out_shape=jax.ShapeDtypeStruct((n_pad, f_out_p), out_dtype),
        grid=(n_pad // tm, n_pad // tk),
        in_specs=in_specs,
        out_specs=out_spec,
        scratch_shapes=scratch_shapes,
        compiler_params=pltpu.CompilerParams(
            dimension_semantics=("parallel", "arbitrary"),
            vmem_limit_bytes=vmem_limit,
        ),
    )(*args)

    # TODO(synk): for truly sparse adjacency, replace the dense (i, k) grid with
    # PrefetchScalarGridSpec + per-row-tile nonzero-block indices so zero blocks
    # are never DMA'd or multiplied.
    return out_p[:n, :f_out]


# ----------------------------- init / demo ------------------------------------


def init_params(key, in_features, out_features, dtype=jnp.float32):
    """Re-implementation of GraphConvolution.reset_parameters (uniform +-stdv)."""
    stdv = 1.0 / math.sqrt(out_features)
    k_w, k_b = jax.random.split(key)
    weight = jax.random.uniform(
        k_w, (in_features, out_features), dtype=dtype, minval=-stdv, maxval=stdv
    )
    bias = jax.random.uniform(
        k_b, (out_features,), dtype=dtype, minval=-stdv, maxval=stdv
    )
    return weight, bias


def _make_adj(key, n):
    raw = jax.random.uniform(key, (n, n))
    adj = (raw > 0.5).astype(jnp.float32) + jnp.eye(n, dtype=jnp.float32)
    return adj / jnp.sum(adj, axis=1, keepdims=True)


if __name__ == "__main__":
    key = jax.random.PRNGKey(0)

    # --- case 1: tiny shapes implied by the module (8 nodes, 16 -> 32), fused ---
    k_x, k_adj, k_params, key = jax.random.split(key, 4)
    N1, FIN1, FOUT1 = 8, 16, 32
    x1 = jax.random.normal(k_x, (N1, FIN1), dtype=jnp.float32)
    adj1 = _make_adj(k_adj, N1)
    w1, b1 = init_params(k_params, FIN1, FOUT1)

    out1 = jax.block_until_ready(graph_convolution(x1, adj1, w1, b1))
    ref1 = adj1 @ (x1 @ w1) + b1[None, :]
    assert out1.shape == (N1, FOUT1)
    assert jnp.allclose(out1, ref1, atol=1e-4, rtol=1e-4)

    # bias=None path (dedicated kernel)
    out1n = jax.block_until_ready(graph_convolution(x1, adj1, w1, None))
    assert jnp.allclose(out1n, adj1 @ (x1 @ w1), atol=1e-4, rtol=1e-4)

    # --- case 2: medium graph, still fused (everything VMEM-resident) ---
    k_x, k_adj, k_params, key = jax.random.split(key, 4)
    N2, FIN2, FOUT2 = 256, 48, 96
    x2 = jax.random.normal(k_x, (N2, FIN2), dtype=jnp.float32)
    adj2 = _make_adj(k_adj, N2)
    w2, b2 = init_params(k_params, FIN2, FOUT2)

    out2 = jax.block_until_ready(graph_convolution(x2, adj2, w2, b2))
    ref2 = adj2 @ (x2 @ w2) + b2[None, :]
    assert out2.shape == (N2, FOUT2)
    assert jnp.allclose(out2, ref2, atol=1e-4, rtol=1e-4)

    # --- case 3: two-stage tiled path (forced), f32, resident support ---
    k_x, k_adj, k_params, key = jax.random.split(key, 4)
    N3, FIN3, FOUT3 = 512, 48, 96
    x3 = jax.random.normal(k_x, (N3, FIN3), dtype=jnp.float32)
    adj3 = _make_adj(k_adj, N3)
    w3, b3 = init_params(k_params, FIN3, FOUT3)
    ref3 = adj3 @ (x3 @ w3) + b3[None, :]

    out3 = jax.block_until_ready(graph_convolution(x3, adj3, w3, b3, fused=False))
    assert out3.shape == (N3, FOUT3)
    assert jnp.allclose(out3, ref3, atol=1e-4, rtol=1e-4)

    out3n = jax.block_until_ready(graph_convolution(x3, adj3, w3, None, fused=False))
    assert jnp.allclose(out3n, adj3 @ (x3 @ w3), atol=1e-4, rtol=1e-4)

    # --- case 4: bf16 MXU operands, f32 accumulation (fused and tiled) ---
    out4f = jax.block_until_ready(
        graph_convolution(x2, adj2, w2, b2, compute_dtype=jnp.bfloat16)
    )
    assert jnp.allclose(out4f, ref2, atol=5e-2, rtol=5e-2)
    out4t = jax.block_until_ready(
        graph_convolution(x3, adj3, w3, b3, compute_dtype=jnp.bfloat16, fused=False)
    )
    assert jnp.allclose(out4t, ref3, atol=5e-2, rtol=5e-2)

    # --- case 5: bf16 inputs / bf16 output (exercises the scratch-accumulator
    #     finalize path in stage 2) ---
    x5 = x3.astype(jnp.bfloat16)
    w5 = w3.astype(jnp.bfloat16)
    b5 = b3.astype(jnp.bfloat16)
    ref5 = adj3 @ (x5.astype(jnp.float32) @ w5.astype(jnp.float32)) + b5.astype(
        jnp.float32
    )[None, :]
    out5 = jax.block_until_ready(graph_convolution(x5, adj3, w5, b5, fused=False))
    assert out5.dtype == jnp.bfloat16
    assert jnp.allclose(out5.astype(jnp.float32), ref5, atol=5e-2, rtol=5e-2)

    print("KERNEL_OK")
</pallas_src>

<mosaic_0001>
module attributes {stable_mosaic.version = 11 : i64} {
  func.func @kernel(%arg0: memref<128x128xf32, #tpu.memory_space<vmem>>, %arg1: memref<128x128xf32, #tpu.memory_space<vmem>>, %arg2: memref<128x128xf32, #tpu.memory_space<vmem>>, %arg3: memref<1x128xf32, #tpu.memory_space<vmem>>, %arg4: memref<128x128xf32, #tpu.memory_space<vmem>>) attributes {dimension_semantics = [], scalar_prefetch = 0 : i64, scratch_operands = 0 : i64, tpu.core_type = #tpu.core_type<tc>} {
    %c0 = arith.constant 0 : index
    %c0_0 = arith.constant 0 : index
    %0 = vector.load %arg0[%c0, %c0_0] : memref<128x128xf32, #tpu.memory_space<vmem>>, vector<128x128xf32>
    %c0_1 = arith.constant 0 : index
    %c0_2 = arith.constant 0 : index
    %1 = vector.load %arg1[%c0_1, %c0_2] : memref<128x128xf32, #tpu.memory_space<vmem>>, vector<128x128xf32>
    %cst = arith.constant dense<0.000000e+00> : vector<128x128xf32>
    %2 = tpu.matmul %0, %1, %cst {dimension_numbers = #tpu.dot_dimension_numbers<[1], [0], [0], [1], [0, 0, 1, 1], [], []>} : vector<128x128xf32>, vector<128x128xf32>, vector<128x128xf32> -> vector<128x128xf32>
    %c0_3 = arith.constant 0 : index
    %c0_4 = arith.constant 0 : index
    %3 = vector.load %arg2[%c0_3, %c0_4] : memref<128x128xf32, #tpu.memory_space<vmem>>, vector<128x128xf32>
    %cst_5 = arith.constant dense<0.000000e+00> : vector<128x128xf32>
    %4 = tpu.matmul %3, %2, %cst_5 {dimension_numbers = #tpu.dot_dimension_numbers<[1], [0], [0], [1], [0, 0, 1, 1], [], []>} : vector<128x128xf32>, vector<128x128xf32>, vector<128x128xf32> -> vector<128x128xf32>
    %c0_6 = arith.constant 0 : index
    %c0_7 = arith.constant 0 : index
    %5 = vector.load %arg3[%c0_6, %c0_7] : memref<1x128xf32, #tpu.memory_space<vmem>>, vector<1x128xf32>
    %6 = vector.broadcast %5 : vector<1x128xf32> to vector<128x128xf32>
    %7 = arith.addf %4, %6 : vector<128x128xf32>
    %c0_8 = arith.constant 0 : index
    %c0_9 = arith.constant 0 : index
    %8 = vector.load %arg4[%c0_8, %c0_9] : memref<128x128xf32, #tpu.memory_space<vmem>>, vector<128x128xf32>
    tpu.vector_store %arg4[%c0_8, %c0_9], %7 {strides = array<i32>} : memref<128x128xf32, #tpu.memory_space<vmem>>, vector<128x128xf32>,
    return
  }
}

</mosaic_0001>

<llo_original>
// kernel: tpu_custom_call.1
$region0: #{tpu_custom_call.1}
  #allocation0 [shape = 'u32[]', space=smem, size = 0x4, offset = 0x4, fixed_abs, tag = 'smem constant byte address 0x4 - core index']
  #allocation1 [shape = 'u32[144,128]{1,0:T(1,128)}', space=vmem, size = 0x12000, scoped, tag = 'internal scratch']
  %s0 = inlined_call_operand.hbm [shape: f32[128,128], index: 0, kind: input, shape index: {}]
  %s1 = inlined_call_operand.hbm [shape: f32[128,128], index: 1, kind: input, shape index: {}]
  %s2 = inlined_call_operand.hbm [shape: f32[128,128], index: 2, kind: input, shape index: {}]
  %s3 = inlined_call_operand.vmem [shape: f32[1,128], index: 3, kind: input, shape index: {}]
  %s4 = inlined_call_operand.hbm [shape: f32[128,128], index: 4, kind: output, shape index: {}]
  %s5 = sld [smem:[#allocation0]]
  $region38: #{tpu_custom_call.1} parent=0
    _
  %s7 = ssub.s32 1, %s5
  %s8 = scalar_select 0, %s7, %s5
  $region1: #{tpu_custom_call.1} parent=0
    #allocation2 [shape = 'u8[65536]{0}', space=vmem, size = 0x10000, scoped, tag = 'input window, operand 0, single buffered']
    #allocation3 [shape = 's32[1]{0}', space=sflag, size = 0x4, scoped, tag = 'scoped memory for tpu_custom_call.1']
    #allocation4 [shape = 's32[1]{0}', space=sflag, size = 0x4, scoped, tag = 'scoped memory for tpu_custom_call.1']
    #allocation5 [shape = 'u8[65536]{0}', space=vmem, size = 0x10000, scoped, tag = 'input window, operand 1, single buffered']
    #allocation6 [shape = 's32[1]{0}', space=sflag, size = 0x4, scoped, tag = 'scoped memory for tpu_custom_call.1']
    #allocation7 [shape = 'u8[65536]{0}', space=vmem, size = 0x10000, scoped, tag = 'input window, operand 2, single buffered']
    #allocation8 [shape = 'u8[65536]{0}', space=vmem, size = 0x10000, scoped, tag = 'output window, operand 0, single buffered']
    %9 = vsyncpa [#allocation3], 0
    %10 = vsyncpa [#allocation6], 0
    %11 = vsyncpa [#allocation4], 0
    // Predicated region
    $region2: #{tpu_custom_call.1} parent=1 // pred_check
      _
    $region3: #{tpu_custom_call.1} parent=1 // pred_check_branch
      %13 = sbr.rel (0) target = $region5
    $region4: #{tpu_custom_call.1} parent=1 // pred_region
      %s15 = ssub.s32 2048, 2048
      %16 = vsyncadd [#allocation3], %s15
      %s17 = sshll.u32 [#allocation2], 4
      %s18 = int_to_ptr.vmem [resolvable:$true] %s17
      %23 = dma.hbm_to_vmem [thread:$0]  %s0, 2048, %s18, [#allocation3], 128, 128, 8
    $region5: #{tpu_custom_call.1} parent=1 // pred_fallthru
      _
    // Predicated region
    $region6: #{tpu_custom_call.1} parent=1 // pred_check
      _
    $region7: #{tpu_custom_call.1} parent=1 // pred_check_branch
      %25 = sbr.rel (0) target = $region9
    $region8: #{tpu_custom_call.1} parent=1 // pred_region
      %s27 = ssub.s32 2048, 2048
      %28 = vsyncadd [#allocation6], %s27
      %s29 = sshll.u32 [#allocation5], 4
      %s30 = int_to_ptr.vmem [resolvable:$true] %s29
      %35 = dma.hbm_to_vmem [thread:$0]  %s1, 2048, %s30, [#allocation6], 128, 128, 8
    $region9: #{tpu_custom_call.1} parent=1 // pred_fallthru
      _
    // Predicated region
    $region10: #{tpu_custom_call.1} parent=1 // pred_check
      _
    $region11: #{tpu_custom_call.1} parent=1 // pred_check_branch
      %37 = sbr.rel (0) target = $region13
    $region12: #{tpu_custom_call.1} parent=1 // pred_region
      %s39 = ssub.s32 2048, 2048
      %40 = vsyncadd [#allocation6], %s39
      %s41 = sshll.u32 [#allocation7], 4
      %s42 = int_to_ptr.vmem [resolvable:$true] %s41
      %47 = dma.hbm_to_vmem [thread:$0]  %s2, 2048, %s42, [#allocation6], 128, 128, 8
    $region13: #{tpu_custom_call.1} parent=1 // pred_fallthru
      _
    // Predicated region
    $region14: #{tpu_custom_call.1} parent=1 // pred_check
      _
    $region15: #{tpu_custom_call.1} parent=1 // pred_check_branch
      %49 = sbr.rel (0) target = $region17
    $region16: #{tpu_custom_call.1} parent=1 // pred_region
      _
    $region17: #{tpu_custom_call.1} parent=1 // pred_fallthru
      _
    // Predicated region
    $region18: #{tpu_custom_call.1} parent=1 // pred_check
      _
    $region19: #{tpu_custom_call.1} parent=1 // pred_check_branch
      %51 = sbr.rel (0) target = $region21
    $region20: #{tpu_custom_call.1} parent=1 // pred_region
      %52 = dma.done [#allocation3], 2048
    $region21: #{tpu_custom_call.1} parent=1 // pred_fallthru
      _
    // Predicated region
    $region22: #{tpu_custom_call.1} parent=1 // pred_check
      _
    $region23: #{tpu_custom_call.1} parent=1 // pred_check_branch
      %54 = sbr.rel (0) target = $region25
    $region24: #{tpu_custom_call.1} parent=1 // pred_region
      %55 = dma.done [#allocation6], 2048
    $region25: #{tpu_custom_call.1} parent=1 // pred_fallthru
      _
    // Predicated region
    $region26: #{tpu_custom_call.1} parent=1 // pred_check
      _
    $region27: #{tpu_custom_call.1} parent=1 // pred_check_branch
      %57 = sbr.rel (0) target = $region29
    $region28: #{tpu_custom_call.1} parent=1 // pred_region
      %58 = dma.done [#allocation6], 2048
    $region29: #{tpu_custom_call.1} parent=1 // pred_fallthru
      _
    %v59 = vld [vmem:[#allocation2] sm:$0xff]
    %v60 = vld [vmem:[#allocation2 + $0x8] sm:$0xff]
    %v61 = vld [vmem:[#allocation2 + $0x10] sm:$0xff]
    %v62 = vld [vmem:[#allocation2 + $0x18] sm:$0xff]
    %v63 = vld [vmem:[#allocation2 + $0x20] sm:$0xff]
    %v64 = vld [vmem:[#allocation2 + $0x28] sm:$0xff]
    %v65 = vld [vmem:[#allocation2 + $0x30] sm:$0xff]
    %v66 = vld [vmem:[#allocation2 + $0x38] sm:$0xff]
    %v67 = vld [vmem:[#allocation2 + $0x40] sm:$0xff]
    %v68 = vld [vmem:[#allocation2 + $0x48] sm:$0xff]
    %v69 = vld [vmem:[#allocation2 + $0x50] sm:$0xff]
    %v70 = vld [vmem:[#allocation2 + $0x58] sm:$0xff]
    %v71 = vld [vmem:[#allocation2 + $0x60] sm:$0xff]
    %v72 = vld [vmem:[#allocation2 + $0x68] sm:$0xff]
    %v73 = vld [vmem:[#allocation2 + $0x70] sm:$0xff]
    %v74 = vld [vmem:[#allocation2 + $0x78] sm:$0xff]
    %v75 = vld [vmem:[#allocation5] sm:$0xff]
    %v76 = vld [vmem:[#allocation5 + $0x8] sm:$0xff]
    %v77 = vld [vmem:[#allocation5 + $0x10] sm:$0xff]
    %v78 = vld [vmem:[#allocation5 + $0x18] sm:$0xff]
    %v79 = vld [vmem:[#allocation5 + $0x20] sm:$0xff]
    %v80 = vld [vmem:[#allocation5 + $0x28] sm:$0xff]
    %v81 = vld [vmem:[#allocation5 + $0x30] sm:$0xff]
    %v82 = vld [vmem:[#allocation5 + $0x38] sm:$0xff]
    %v83 = vld [vmem:[#allocation5 + $0x40] sm:$0xff]
    %v84 = vld [vmem:[#allocation5 + $0x48] sm:$0xff]
    %v85 = vld [vmem:[#allocation5 + $0x50] sm:$0xff]
    %v86 = vld [vmem:[#allocation5 + $0x58] sm:$0xff]
    %v87 = vld [vmem:[#allocation5 + $0x60] sm:$0xff]
    %v88 = vld [vmem:[#allocation5 + $0x68] sm:$0xff]
    %v89 = vld [vmem:[#allocation5 + $0x70] sm:$0xff]
    %v90 = vld [vmem:[#allocation5 + $0x78] sm:$0xff]
    %91 = vmatprep.subr.mxu0 0.0
    %92 = vmatpush1.msra.mxu0 %v75
    %93 = vmatprep.subr.mxu0 0.0
    %94 = vmatpush1.msra.mxu0 %v76
    %95 = vmatprep.subr.mxu0 0.0
    %96 = vmatpush1.msra.mxu0 %v77
    %97 = vmatprep.subr.mxu0 0.0
    %98 = vmatpush1.msra.mxu0 %v78
    %99 = vmatprep.subr.mxu0 0.0
    %100 = vmatpush1.msra.mxu0 %v79
    %101 = vmatprep.subr.mxu0 0.0
    %102 = vmatpush1.msra.mxu0 %v80
    %103 = vmatprep.subr.mxu0 0.0
    %104 = vmatpush1.msra.mxu0 %v81
    %105 = vmatprep.subr.mxu0 0.0
    %106 = vmatpush1.msra.mxu0 %v82
    %107 = vmatprep.subr.mxu0 0.0
    %108 = vmatpush1.msra.mxu0 %v83
    %109 = vmatprep.subr.mxu0 0.0
    %110 = vmatpush1.msra.mxu0 %v84
    %111 = vmatprep.subr.mxu0 0.0
    %112 = vmatpush1.msra.mxu0 %v85
    %113 = vmatprep.subr.mxu0 0.0
    %114 = vmatpush1.msra.mxu0 %v86
    %115 = vmatprep.subr.mxu0 0.0
    %116 = vmatpush1.msra.mxu0 %v87
    %117 = vmatprep.subr.mxu0 0.0
    %118 = vmatpush1.msra.mxu0 %v88
    %119 = vmatprep.subr.mxu0 0.0
    %120 = vmatpush1.msra.mxu0 %v89
    %121 = vmatprep.subr.mxu0 0.0
    %122 = vmatpush1.msra.mxu0 %v90
    %123 = vmatprep.subr.mxu0 0.0
    %124 = vmatpush1.msra.mxu0 0.0
    %125 = vmatprep.subr.mxu0 0.0
    %126 = vmatpush1.msra.mxu0 0.0
    %127 = vmatprep.subr.mxu0 0.0
    %128 = vmatpush1.msra.mxu0 0.0
    %129 = vmatprep.subr.mxu0 0.0
    %130 = vmatpush1.msra.mxu0 0.0
    %131 = vmatprep.subr.mxu0 0.0
    %132 = vmatpush1.msra.mxu0 0.0
    %133 = vmatprep.subr.mxu0 0.0
    %134 = vmatpush1.msra.mxu0 0.0
    %135 = vmatprep.subr.mxu0 0.0
    %136 = vmatpush1.msra.mxu0 0.0
    %137 = vmatprep.subr.mxu0 0.0
    %138 = vmatpush1.msra.mxu0 0.0
    %139 = vmatprep.subr.mxu0 0.0
    %140 = vmatpush1.msra.mxu0 0.0
    %141 = vmatprep.subr.mxu0 0.0
    %142 = vmatpush1.msra.mxu0 0.0
    %143 = vmatprep.subr.mxu0 0.0
    %144 = vmatpush1.msra.mxu0 0.0
    %145 = vmatprep.subr.mxu0 0.0
    %146 = vmatpush1.msra.mxu0 0.0
    %147 = vmatprep.subr.mxu0 0.0
    %148 = vmatpush1.msra.mxu0 0.0
    %149 = vmatprep.subr.mxu0 0.0
    %150 = vmatpush1.msra.mxu0 0.0
    %151 = vmatprep.subr.mxu0 0.0
    %152 = vmatpush1.msra.mxu0 0.0
    %153 = vmatprep.subr.mxu0 0.0
    %154 = vmatpush1.msra.mxu0 0.0
    %155 = vmatprep.mubr.f32.mxu0 0.0
    %156 = vmatmul.mubr.f32.gmra.mrb[0].mxu0 %v59
    %v157 = vpop.f32.mrb[0].mxu0
    %v158 = vadd.f32 0.0, %v157
    %v159 = vpop.f32.mrb[0].mxu0
    %160 = vmatprep.mubr.f32.mxu0 0.0
    %161 = vmatmul.mubr.f32.gmra.mrb[0].mxu0 %v60
    %v162 = vpop.f32.mrb[0].mxu0
    %v163 = vadd.f32 0.0, %v162
    %v164 = vpop.f32.mrb[0].mxu0
    %165 = vmatprep.mubr.f32.mxu0 0.0
    %166 = vmatmul.mubr.f32.gmra.mrb[0].mxu0 %v61
    %v167 = vpop.f32.mrb[0].mxu0
    %v168 = vadd.f32 0.0, %v167
    %v169 = vpop.f32.mrb[0].mxu0
    %170 = vmatprep.mubr.f32.mxu0 0.0
    %171 = vmatmul.mubr.f32.gmra.mrb[0].mxu0 %v62
    %v172 = vpop.f32.mrb[0].mxu0
    %v173 = vadd.f32 0.0, %v172
    %v174 = vpop.f32.mrb[0].mxu0
    %175 = vmatprep.mubr.f32.mxu0 0.0
    %176 = vmatmul.mubr.f32.gmra.mrb[0].mxu0 %v63
    %v177 = vpop.f32.mrb[0].mxu0
    %v178 = vadd.f32 0.0, %v177
    %v179 = vpop.f32.mrb[0].mxu0
    %180 = vmatprep.mubr.f32.mxu0 0.0
    %181 = vmatmul.mubr.f32.gmra.mrb[0].mxu0 %v64
    %v182 = vpop.f32.mrb[0].mxu0
    %v183 = vadd.f32 0.0, %v182
    %v184 = vpop.f32.mrb[0].mxu0
    %185 = vmatprep.mubr.f32.mxu0 0.0
    %186 = vmatmul.mubr.f32.gmra.mrb[0].mxu0 %v65
    %v187 = vpop.f32.mrb[0].mxu0
    %v188 = vadd.f32 0.0, %v187
    %v189 = vpop.f32.mrb[0].mxu0
    %190 = vmatprep.mubr.f32.mxu0 0.0
    %191 = vmatmul.mubr.f32.gmra.mrb[0].mxu0 %v66
    %v192 = vpop.f32.mrb[0].mxu0
    %v193 = vadd.f32 0.0, %v192
    %v194 = vpop.f32.mrb[0].mxu0
    %195 = vmatprep.mubr.f32.mxu0 0.0
    %196 = vmatmul.mubr.f32.gmra.mrb[0].mxu0 %v67
    %v197 = vpop.f32.mrb[0].mxu0
    %v198 = vadd.f32 0.0, %v197
    %v199 = vpop.f32.mrb[0].mxu0
    %200 = vmatprep.mubr.f32.mxu0 0.0
    %201 = vmatmul.mubr.f32.gmra.mrb[0].mxu0 %v68
    %v202 = vpop.f32.mrb[0].mxu0
    %v203 = vadd.f32 0.0, %v202
    %v204 = vpop.f32.mrb[0].mxu0
    %205 = vmatprep.mubr.f32.mxu0 0.0
    %206 = vmatmul.mubr.f32.gmra.mrb[0].mxu0 %v69
    %v207 = vpop.f32.mrb[0].mxu0
    %v208 = vadd.f32 0.0, %v207
    %v209 = vpop.f32.mrb[0].mxu0
    %210 = vmatprep.mubr.f32.mxu0 0.0
    %211 = vmatmul.mubr.f32.gmra.mrb[0].mxu0 %v70
    %v212 = vpop.f32.mrb[0].mxu0
    %v213 = vadd.f32 0.0, %v212
    %v214 = vpop.f32.mrb[0].mxu0
    %215 = vmatprep.mubr.f32.mxu0 0.0
    %216 = vmatmul.mubr.f32.gmra.mrb[0].mxu0 %v71
    %v217 = vpop.f32.mrb[0].mxu0
    %v218 = vadd.f32 0.0, %v217
    %v219 = vpop.f32.mrb[0].mxu0
    %220 = vmatprep.mubr.f32.mxu0 0.0
    %221 = vmatmul.mubr.f32.gmra.mrb[0].mxu0 %v72
    %v222 = vpop.f32.mrb[0].mxu0
    %v223 = vadd.f32 0.0, %v222
    %v224 = vpop.f32.mrb[0].mxu0
    %225 = vmatprep.mubr.f32.mxu0 0.0
    %226 = vmatmul.mubr.f32.gmra.mrb[0].mxu0 %v73
    %v227 = vpop.f32.mrb[0].mxu0
    %v228 = vadd.f32 0.0, %v227
    %v229 = vpop.f32.mrb[0].mxu0
    %230 = vmatprep.mubr.f32.mxu0 0.0
    %231 = vmatmul.mubr.f32.gmra.mrb[0].mxu0 %v74
    %v232 = vpop.f32.mrb[0].mxu0
    %v233 = vadd.f32 0.0, %v232
    %v234 = vpop.f32.mrb[0].mxu0
    %235 = vdwg.mxu0
    %v236 = vld [vmem:[#allocation7] sm:$0xff]
    %v237 = vld [vmem:[#allocation7 + $0x8] sm:$0xff]
    %v238 = vld [vmem:[#allocation7 + $0x10] sm:$0xff]
    %v239 = vld [vmem:[#allocation7 + $0x18] sm:$0xff]
    %v240 = vld [vmem:[#allocation7 + $0x20] sm:$0xff]
    %v241 = vld [vmem:[#allocation7 + $0x28] sm:$0xff]
    %v242 = vld [vmem:[#allocation7 + $0x30] sm:$0xff]
    %v243 = vld [vmem:[#allocation7 + $0x38] sm:$0xff]
    %v244 = vld [vmem:[#allocation7 + $0x40] sm:$0xff]
    %v245 = vld [vmem:[#allocation7 + $0x48] sm:$0xff]
    %v246 = vld [vmem:[#allocation7 + $0x50] sm:$0xff]
    %v247 = vld [vmem:[#allocation7 + $0x58] sm:$0xff]
    %v248 = vld [vmem:[#allocation7 + $0x60] sm:$0xff]
    %v249 = vld [vmem:[#allocation7 + $0x68] sm:$0xff]
    %v250 = vld [vmem:[#allocation7 + $0x70] sm:$0xff]
    %v251 = vld [vmem:[#allocation7 + $0x78] sm:$0xff]
    %v252 = vld [vmem:[%s3] sm:$0x1]
    %v254 = vlaneseq
    %v255 = vshrl.u32 %v254, 7
    %v256 = vsub.s32 0, %v255
    %v257 = vrot.slane %v252, %v256
    %259 = vmatprep.subr.mxu0 0.0
    %260 = vmatpush1.msra.mxu0 %v158
    %261 = vmatprep.subr.mxu0 0.0
    %262 = vmatpush1.msra.mxu0 %v163
    %263 = vmatprep.subr.mxu0 0.0
    %264 = vmatpush1.msra.mxu0 %v168
    %265 = vmatprep.subr.mxu0 0.0
    %266 = vmatpush1.msra.mxu0 %v173
    %267 = vmatprep.subr.mxu0 0.0
    %268 = vmatpush1.msra.mxu0 %v178
    %269 = vmatprep.subr.mxu0 0.0
    %270 = vmatpush1.msra.mxu0 %v183
    %271 = vmatprep.subr.mxu0 0.0
    %272 = vmatpush1.msra.mxu0 %v188
    %273 = vmatprep.subr.mxu0 0.0
    %274 = vmatpush1.msra.mxu0 %v193
    %275 = vmatprep.subr.mxu0 0.0
    %276 = vmatpush1.msra.mxu0 %v198
    %277 = vmatprep.subr.mxu0 0.0
    %278 = vmatpush1.msra.mxu0 %v203
    %279 = vmatprep.subr.mxu0 0.0
    %280 = vmatpush1.msra.mxu0 %v208
    %281 = vmatprep.subr.mxu0 0.0
    %282 = vmatpush1.msra.mxu0 %v213
    %283 = vmatprep.subr.mxu0 0.0
    %284 = vmatpush1.msra.mxu0 %v218
    %285 = vmatprep.subr.mxu0 0.0
    %286 = vmatpush1.msra.mxu0 %v223
    %287 = vmatprep.subr.mxu0 0.0
    %288 = vmatpush1.msra.mxu0 %v228
    %289 = vmatprep.subr.mxu0 0.0
    %290 = vmatpush1.msra.mxu0 %v233
    %291 = vmatprep.subr.mxu0 0.0
    %292 = vmatpush1.msra.mxu0 0.0
    %293 = vmatprep.subr.mxu0 0.0
    %294 = vmatpush1.msra.mxu0 0.0
    %295 = vmatprep.subr.mxu0 0.0
    %296 = vmatpush1.msra.mxu0 0.0
    %297 = vmatprep.subr.mxu0 0.0
    %298 = vmatpush1.msra.mxu0 0.0
    %299 = vmatprep.subr.mxu0 0.0
    %300 = vmatpush1.msra.mxu0 0.0
    %301 = vmatprep.subr.mxu0 0.0
    %302 = vmatpush1.msra.mxu0 0.0
    %303 = vmatprep.subr.mxu0 0.0
    %304 = vmatpush1.msra.mxu0 0.0
    %305 = vmatprep.subr.mxu0 0.0
    %306 = vmatpush1.msra.mxu0 0.0
    %307 = vmatprep.subr.mxu0 0.0
    %308 = vmatpush1.msra.mxu0 0.0
    %309 = vmatprep.subr.mxu0 0.0
    %310 = vmatpush1.msra.mxu0 0.0
    %311 = vmatprep.subr.mxu0 0.0
    %312 = vmatpush1.msra.mxu0 0.0
    %313 = vmatprep.subr.mxu0 0.0
    %314 = vmatpush1.msra.mxu0 0.0
    %315 = vmatprep.subr.mxu0 0.0
    %316 = vmatpush1.msra.mxu0 0.0
    %317 = vmatprep.subr.mxu0 0.0
    %318 = vmatpush1.msra.mxu0 0.0
    %319 = vmatprep.subr.mxu0 0.0
    %320 = vmatpush1.msra.mxu0 0.0
    %321 = vmatprep.subr.mxu0 0.0
    %322 = vmatpush1.msra.mxu0 0.0
    %323 = vmatprep.mubr.f32.mxu0 0.0
    %324 = vmatmul.mubr.f32.gmra.mrb[0].mxu0 %v236
    %v325 = vpop.f32.mrb[0].mxu0
    %v326 = vadd.f32 %v257, %v325
    %v327 = vpop.f32.mrb[0].mxu0
    %328 = vmatprep.mubr.f32.mxu0 0.0
    %329 = vmatmul.mubr.f32.gmra.mrb[0].mxu0 %v237
    %v330 = vpop.f32.mrb[0].mxu0
    %v331 = vadd.f32 %v257, %v330
    %v332 = vpop.f32.mrb[0].mxu0
    %333 = vmatprep.mubr.f32.mxu0 0.0
    %334 = vmatmul.mubr.f32.gmra.mrb[0].mxu0 %v238
    %v335 = vpop.f32.mrb[0].mxu0
    %v336 = vadd.f32 %v257, %v335
    %v337 = vpop.f32.mrb[0].mxu0
    %338 = vmatprep.mubr.f32.mxu0 0.0
    %339 = vmatmul.mubr.f32.gmra.mrb[0].mxu0 %v239
    %v340 = vpop.f32.mrb[0].mxu0
    %v341 = vadd.f32 %v257, %v340
    %v342 = vpop.f32.mrb[0].mxu0
    %343 = vmatprep.mubr.f32.mxu0 0.0
    %344 = vmatmul.mubr.f32.gmra.mrb[0].mxu0 %v240
    %v345 = vpop.f32.mrb[0].mxu0
    %v346 = vadd.f32 %v257, %v345
    %v347 = vpop.f32.mrb[0].mxu0
    %348 = vmatprep.mubr.f32.mxu0 0.0
    %349 = vmatmul.mubr.f32.gmra.mrb[0].mxu0 %v241
    %v350 = vpop.f32.mrb[0].mxu0
    %v351 = vadd.f32 %v257, %v350
    %v352 = vpop.f32.mrb[0].mxu0
    %353 = vmatprep.mubr.f32.mxu0 0.0
    %354 = vmatmul.mubr.f32.gmra.mrb[0].mxu0 %v242
    %v355 = vpop.f32.mrb[0].mxu0
    %v356 = vadd.f32 %v257, %v355
    %v357 = vpop.f32.mrb[0].mxu0
    %358 = vmatprep.mubr.f32.mxu0 0.0
    %359 = vmatmul.mubr.f32.gmra.mrb[0].mxu0 %v243
    %v360 = vpop.f32.mrb[0].mxu0
    %v361 = vadd.f32 %v257, %v360
    %v362 = vpop.f32.mrb[0].mxu0
    %363 = vmatprep.mubr.f32.mxu0 0.0
    %364 = vmatmul.mubr.f32.gmra.mrb[0].mxu0 %v244
    %v365 = vpop.f32.mrb[0].mxu0
    %v366 = vadd.f32 %v257, %v365
    %v367 = vpop.f32.mrb[0].mxu0
    %368 = vmatprep.mubr.f32.mxu0 0.0
    %369 = vmatmul.mubr.f32.gmra.mrb[0].mxu0 %v245
    %v370 = vpop.f32.mrb[0].mxu0
    %v371 = vadd.f32 %v257, %v370
    %v372 = vpop.f32.mrb[0].mxu0
    %373 = vmatprep.mubr.f32.mxu0 0.0
    %374 = vmatmul.mubr.f32.gmra.mrb[0].mxu0 %v246
    %v375 = vpop.f32.mrb[0].mxu0
    %v376 = vadd.f32 %v257, %v375
    %v377 = vpop.f32.mrb[0].mxu0
    %378 = vmatprep.mubr.f32.mxu0 0.0
    %379 = vmatmul.mubr.f32.gmra.mrb[0].mxu0 %v247
    %v380 = vpop.f32.mrb[0].mxu0
    %v381 = vadd.f32 %v257, %v380
    %v382 = vpop.f32.mrb[0].mxu0
    %383 = vmatprep.mubr.f32.mxu0 0.0
    %384 = vmatmul.mubr.f32.gmra.mrb[0].mxu0 %v248
    %v385 = vpop.f32.mrb[0].mxu0
    %v386 = vadd.f32 %v257, %v385
    %v387 = vpop.f32.mrb[0].mxu0
    %388 = vmatprep.mubr.f32.mxu0 0.0
    %389 = vmatmul.mubr.f32.gmra.mrb[0].mxu0 %v249
    %v390 = vpop.f32.mrb[0].mxu0
    %v391 = vadd.f32 %v257, %v390
    %v392 = vpop.f32.mrb[0].mxu0
    %393 = vmatprep.mubr.f32.mxu0 0.0
    %394 = vmatmul.mubr.f32.gmra.mrb[0].mxu0 %v250
    %v395 = vpop.f32.mrb[0].mxu0
    %v396 = vadd.f32 %v257, %v395
    %v397 = vpop.f32.mrb[0].mxu0
    %398 = vmatprep.mubr.f32.mxu0 0.0
    %399 = vmatmul.mubr.f32.gmra.mrb[0].mxu0 %v251
    %v400 = vpop.f32.mrb[0].mxu0
    %v401 = vadd.f32 %v257, %v400
    %v402 = vpop.f32.mrb[0].mxu0
    %403 = vdwg.mxu0
    %404 = vst [vmem:[#allocation8] sm:$0xff] %v326
    %405 = vst [vmem:[#allocation8 + $0x8] sm:$0xff] %v331
    %406 = vst [vmem:[#allocation8 + $0x10] sm:$0xff] %v336
    %407 = vst [vmem:[#allocation8 + $0x18] sm:$0xff] %v341
    %408 = vst [vmem:[#allocation8 + $0x20] sm:$0xff] %v346
    %409 = vst [vmem:[#allocation8 + $0x28] sm:$0xff] %v351
    %410 = vst [vmem:[#allocation8 + $0x30] sm:$0xff] %v356
    %411 = vst [vmem:[#allocation8 + $0x38] sm:$0xff] %v361
    %412 = vst [vmem:[#allocation8 + $0x40] sm:$0xff] %v366
    %413 = vst [vmem:[#allocation8 + $0x48] sm:$0xff] %v371
    %414 = vst [vmem:[#allocation8 + $0x50] sm:$0xff] %v376
    %415 = vst [vmem:[#allocation8 + $0x58] sm:$0xff] %v381
    %416 = vst [vmem:[#allocation8 + $0x60] sm:$0xff] %v386
    %417 = vst [vmem:[#allocation8 + $0x68] sm:$0xff] %v391
    %418 = vst [vmem:[#allocation8 + $0x70] sm:$0xff] %v396
    %419 = vst [vmem:[#allocation8 + $0x78] sm:$0xff] %v401
    // Predicated region
    $region30: #{tpu_custom_call.1} parent=1 // pred_check
      _
    $region31: #{tpu_custom_call.1} parent=1 // pred_check_branch
      %421 = sbr.rel (0) target = $region33
    $region32: #{tpu_custom_call.1} parent=1 // pred_region
      %s423 = ssub.s32 2048, 2048
      %424 = vsyncadd [#allocation4], %s423
      %s425 = sshll.u32 [#allocation8], 4
      %s426 = int_to_ptr.vmem [resolvable:$true] %s425
      %431 = dma.vmem_to_hbm [thread:$0]  %s426, 2048, %s4, [#allocation4], 128, 128, 8
    $region33: #{tpu_custom_call.1} parent=1 // pred_fallthru
      _
    // Predicated region
    $region34: #{tpu_custom_call.1} parent=1 // pred_check
      _
    $region35: #{tpu_custom_call.1} parent=1 // pred_check_branch
      %433 = sbr.rel (0) target = $region37
    $region36: #{tpu_custom_call.1} parent=1 // pred_region
      %434 = dma.done [#allocation4], 2048
    $region37: #{tpu_custom_call.1} parent=1 // pred_fallthru
      _
    %435 = vsyncpa [#allocation3], 1
    %436 = vsyncpa [#allocation6], 1
    %437 = vsyncpa [#allocation4], 1

</llo_original>
